<compile_context>
chip_gen: v7x
topology: tpu7x:2x2x1
jax: 0.10.0
libtpu: 0.0.40
codegen_flags: <defaults>
</compile_context>

<pallas_src>
import functools

import jax
import jax.numpy as jnp
import numpy as np
from jax.experimental import pallas as pl
from jax.experimental.pallas import tpu as pltpu


def _round_up(x, m):
    return int(-(-x // m) * m)


def _pad_to(a, shape):
    pads = [(0, t - s) for s, t in zip(a.shape, shape)]
    return jnp.pad(a, pads)


def _mlp_kernel(x_ref, w1_ref, b1_ref, w2_ref, b2_ref, w3_ref, o_ref):
    # x / weights are bf16; accumulate in f32 on the MXU, keep bias/ReLU/clip in f32.
    x = x_ref[...]                                                           # (TB, Dp) bf16
    h1 = jnp.dot(x, w1_ref[...], preferred_element_type=jnp.float32) + b1_ref[...]
    h1 = jnp.maximum(h1, 0.0).astype(jnp.bfloat16)                           # ReLU (VPU)
    h2 = jnp.dot(h1, w2_ref[...], preferred_element_type=jnp.float32) + b2_ref[...]
    h2 = jnp.maximum(h2, 0.0).astype(jnp.bfloat16)                           # ReLU (VPU)
    logits = jnp.dot(h2, w3_ref[...], preferred_element_type=jnp.float32)
    o_ref[...] = jnp.clip(logits, -5.0, 5.0)                                 # torch.clamp(-5, 5)


def prepare_params(params):
    """One-time (load-time) prep: transpose to (in, out), zero-pad to lane
    multiples, and cast weights to bf16.  Keeps this out of the per-call path."""
    D = params["w1"].shape[1]          # input_size (768)
    H = params["w1"].shape[0]          # hidden     (200)
    C = params["w3"].shape[0]          # n_class    (2)
    Dp = _round_up(D, 128)
    Hp = _round_up(H, 128)
    Cp = max(128, _round_up(C, 128))   # keep output lane-dense (>=128 lanes)

    prepped = {
        "w1": _pad_to(params["w1"].T.astype(jnp.bfloat16), (Dp, Hp)),
        "b1": _pad_to(params["b1"].reshape(1, -1).astype(jnp.float32), (1, Hp)),
        "w2": _pad_to(params["w2"].T.astype(jnp.bfloat16), (Hp, Hp)),
        "b2": _pad_to(params["b2"].reshape(1, -1).astype(jnp.float32), (1, Hp)),
        "w3": _pad_to(params["w3"].T.astype(jnp.bfloat16), (Hp, Cp)),
    }
    dims = {"D": D, "H": H, "C": C, "Dp": Dp, "Hp": Hp, "Cp": Cp}
    return prepped, dims


@functools.partial(jax.jit, static_argnames=("D", "C", "Dp", "Hp", "Cp"))
def _forward_impl(x, w1, b1, w2, b2, w3, *, D, C, Dp, Hp, Cp):
    B = x.shape[0]

    # Batch tile: multiple of 8 sublanes; 256 rows keeps all MXUs busy on v5e
    # and amortizes per-step grid overhead; small demo batches stay tiny.
    TB = min(256, _round_up(B, 8))
    Bp = _round_up(B, TB)
    nb = Bp // TB

    x_p = _pad_to(x.astype(jnp.bfloat16), (Bp, Dp))

    # Working-set-derived VMEM budget (with 2x headroom), not the full chip VMEM.
    weight_bytes = (Dp * Hp + Hp * Hp + Hp * Cp) * 2 + 2 * Hp * 4
    x_bytes = 2 * TB * Dp * 2          # double-buffered bf16 input tile
    out_bytes = 2 * TB * Cp * 4        # double-buffered f32 output tile
    interm_bytes = 3 * TB * Hp * 4     # h1/h2/logits live values (rough)
    vmem_limit = int(min(64 << 20,
                         max(8 << 20, 2 * (weight_bytes + x_bytes + out_bytes + interm_bytes))))

    cost = pl.CostEstimate(
        flops=2 * Bp * (Dp * Hp + Hp * Hp + Hp * Cp),
        transcendentals=0,
        bytes_accessed=Bp * Dp * 2 + weight_bytes + Bp * Cp * 4,
    )

    out_p = pl.pallas_call(
        _mlp_kernel,
        out_shape=jax.ShapeDtypeStruct((Bp, Cp), jnp.float32),
        grid=(nb,),
        in_specs=[
            pl.BlockSpec((TB, Dp), lambda i: (i, 0)),   # x: batch-tiled, pipelined
            pl.BlockSpec((Dp, Hp), lambda i: (0, 0)),   # w1: resident
            pl.BlockSpec((1, Hp), lambda i: (0, 0)),    # b1: resident
            pl.BlockSpec((Hp, Hp), lambda i: (0, 0)),   # w2: resident
            pl.BlockSpec((1, Hp), lambda i: (0, 0)),    # b2: resident
            pl.BlockSpec((Hp, Cp), lambda i: (0, 0)),   # w3: resident
        ],
        out_specs=pl.BlockSpec((TB, Cp), lambda i: (i, 0)),
        compiler_params=pltpu.CompilerParams(
            dimension_semantics=("parallel",),          # shard batch tiles across TCs (v7x)
            vmem_limit_bytes=vmem_limit,
        ),
        cost_estimate=cost,
    )(x_p, w1, b1, w2, b2, w3)

    return out_p[:B, :C]


def domain_classifier_forward(x, prepared, dims):
    """x: (B, input_size) float32.  prepared/dims: output of prepare_params."""
    return _forward_impl(
        x, prepared["w1"], prepared["b1"], prepared["w2"], prepared["b2"], prepared["w3"],
        D=dims["D"], C=dims["C"], Dp=dims["Dp"], Hp=dims["Hp"], Cp=dims["Cp"],
    )


def init_params(key, input_size=768, hidden=200, n_class=2):
    """Deterministic init mimicking PyTorch nn.Linear default (uniform ±1/sqrt(fan_in))."""
    k1, k2, k3, k4, k5 = jax.random.split(key, 5)
    u = lambda k, shape, fan_in: jax.random.uniform(
        k, shape, jnp.float32, -1.0 / np.sqrt(fan_in), 1.0 / np.sqrt(fan_in))
    return {
        "w1": u(k1, (hidden, input_size), input_size),
        "b1": u(k2, (hidden,), input_size),
        "w2": u(k3, (hidden, hidden), hidden),
        "b2": u(k4, (hidden,), hidden),
        "w3": u(k5, (n_class, hidden), hidden),   # final layer: bias=False
    }


def reference_forward(x, p):
    h1 = jnp.maximum(x @ p["w1"].T + p["b1"], 0.0)
    h2 = jnp.maximum(h1 @ p["w2"].T + p["b2"], 0.0)
    logits = h2 @ p["w3"].T
    return jnp.clip(logits, -5.0, 5.0)


if __name__ == "__main__":
    key = jax.random.PRNGKey(0)
    kx, kp = jax.random.split(key)

    B, INPUT_SIZE, N_CLASS = 8, 768, 2
    x = jax.random.normal(kx, (B, INPUT_SIZE), jnp.float32)
    params = init_params(kp, input_size=INPUT_SIZE, hidden=200, n_class=N_CLASS)

    # One-time parameter prep (transpose/pad/bf16 cast) outside the hot path.
    prepared, dims = prepare_params(params)

    logits = domain_classifier_forward(x, prepared, dims)
    logits = jax.block_until_ready(logits)

    ref = reference_forward(x, params)
    assert logits.shape == (B, N_CLASS), logits.shape
    # bf16 weights/activations with f32 accumulation -> ~1e-2 relative error budget.
    np.testing.assert_allclose(np.asarray(logits), np.asarray(ref), rtol=2e-2, atol=2e-2)

    # TODO(synk): loss / accuracy branches (cross_entropy, uniform_loss, argmax acc)
    # are training-time glue outside the hot path and are not implemented in-kernel.
    print("KERNEL_OK")
</pallas_src>

<mosaic_0001>
module attributes {stable_mosaic.version = 11 : i64} {
  func.func @_mlp_kernel(%arg0: i32, %arg1: memref<8x768xbf16, #tpu.memory_space<vmem>>, %arg2: memref<768x256xbf16, #tpu.memory_space<vmem>>, %arg3: memref<1x256xf32, #tpu.memory_space<vmem>>, %arg4: memref<256x256xbf16, #tpu.memory_space<vmem>>, %arg5: memref<1x256xf32, #tpu.memory_space<vmem>>, %arg6: memref<256x128xbf16, #tpu.memory_space<vmem>>, %arg7: memref<8x128xf32, #tpu.memory_space<vmem>>) attributes {dimension_semantics = [#tpu.dimension_semantics<parallel>], iteration_bounds = array<i64: 1>, scalar_prefetch = 0 : i64, scratch_operands = 0 : i64, tpu.core_type = #tpu.core_type<tc>, window_params = [{transform_indices = @transform_0, window_bounds = array<i64: 8, 768>}, {pipeline_mode = #tpu.pipeline_mode<synchronous>, transform_indices = @transform_1, window_bounds = array<i64: 768, 256>}, {pipeline_mode = #tpu.pipeline_mode<synchronous>, transform_indices = @transform_2, window_bounds = array<i64: 1, 256>}, {pipeline_mode = #tpu.pipeline_mode<synchronous>, transform_indices = @transform_3, window_bounds = array<i64: 256, 256>}, {pipeline_mode = #tpu.pipeline_mode<synchronous>, transform_indices = @transform_4, window_bounds = array<i64: 1, 256>}, {pipeline_mode = #tpu.pipeline_mode<synchronous>, transform_indices = @transform_5, window_bounds = array<i64: 256, 128>}, {transform_indices = @transform_6, window_bounds = array<i64: 8, 128>}]} {
    %c0 = arith.constant 0 : index
    %c0_0 = arith.constant 0 : index
    %0 = vector.load %arg1[%c0, %c0_0] : memref<8x768xbf16, #tpu.memory_space<vmem>>, vector<8x768xbf16>
    %c0_1 = arith.constant 0 : index
    %c0_2 = arith.constant 0 : index
    %1 = vector.load %arg2[%c0_1, %c0_2] : memref<768x256xbf16, #tpu.memory_space<vmem>>, vector<768x256xbf16>
    %cst = arith.constant dense<0.000000e+00> : vector<8x256xf32>
    %2 = tpu.matmul %0, %1, %cst {dimension_numbers = #tpu.dot_dimension_numbers<[1], [0], [0], [1], [0, 0, 1, 1], [], []>} : vector<8x768xbf16>, vector<768x256xbf16>, vector<8x256xf32> -> vector<8x256xf32>
    %c0_3 = arith.constant 0 : index
    %c0_4 = arith.constant 0 : index
    %3 = vector.load %arg3[%c0_3, %c0_4] : memref<1x256xf32, #tpu.memory_space<vmem>>, vector<1x256xf32>
    %4 = vector.broadcast %3 : vector<1x256xf32> to vector<8x256xf32>
    %5 = arith.addf %2, %4 : vector<8x256xf32>
    %cst_5 = arith.constant 0.000000e+00 : f32
    %6 = vector.broadcast %cst_5 : f32 to vector<8x256xf32>
    %7 = arith.maximumf %5, %6 : vector<8x256xf32>
    %8 = arith.truncf %7 : vector<8x256xf32> to vector<8x256xbf16>
    %c0_6 = arith.constant 0 : index
    %c0_7 = arith.constant 0 : index
    %9 = vector.load %arg4[%c0_6, %c0_7] : memref<256x256xbf16, #tpu.memory_space<vmem>>, vector<256x256xbf16>
    %cst_8 = arith.constant dense<0.000000e+00> : vector<8x256xf32>
    %10 = tpu.matmul %8, %9, %cst_8 {dimension_numbers = #tpu.dot_dimension_numbers<[1], [0], [0], [1], [0, 0, 1, 1], [], []>} : vector<8x256xbf16>, vector<256x256xbf16>, vector<8x256xf32> -> vector<8x256xf32>
    %c0_9 = arith.constant 0 : index
    %c0_10 = arith.constant 0 : index
    %11 = vector.load %arg5[%c0_9, %c0_10] : memref<1x256xf32, #tpu.memory_space<vmem>>, vector<1x256xf32>
    %12 = vector.broadcast %11 : vector<1x256xf32> to vector<8x256xf32>
    %13 = arith.addf %10, %12 : vector<8x256xf32>
    %cst_11 = arith.constant 0.000000e+00 : f32
    %14 = vector.broadcast %cst_11 : f32 to vector<8x256xf32>
    %15 = arith.maximumf %13, %14 : vector<8x256xf32>
    %16 = arith.truncf %15 : vector<8x256xf32> to vector<8x256xbf16>
    %c0_12 = arith.constant 0 : index
    %c0_13 = arith.constant 0 : index
    %17 = vector.load %arg6[%c0_12, %c0_13] : memref<256x128xbf16, #tpu.memory_space<vmem>>, vector<256x128xbf16>
    %cst_14 = arith.constant dense<0.000000e+00> : vector<8x128xf32>
    %18 = tpu.matmul %16, %17, %cst_14 {dimension_numbers = #tpu.dot_dimension_numbers<[1], [0], [0], [1], [0, 0, 1, 1], [], []>} : vector<8x256xbf16>, vector<256x128xbf16>, vector<8x128xf32> -> vector<8x128xf32>
    %cst_15 = arith.constant -5.000000e+00 : f32
    %cst_16 = arith.constant 5.000000e+00 : f32
    %19 = vector.broadcast %cst_15 : f32 to vector<8x128xf32>
    %20 = arith.maximumf %19, %18 : vector<8x128xf32>
    %21 = vector.broadcast %cst_16 : f32 to vector<8x128xf32>
    %22 = arith.minimumf %21, %20 : vector<8x128xf32>
    %c0_17 = arith.constant 0 : index
    %c0_18 = arith.constant 0 : index
    %23 = vector.load %arg7[%c0_17, %c0_18] : memref<8x128xf32, #tpu.memory_space<vmem>>, vector<8x128xf32>
    tpu.vector_store %arg7[%c0_17, %c0_18], %22 {strides = array<i32>} : memref<8x128xf32, #tpu.memory_space<vmem>>, vector<8x128xf32>,
    return
  }
  func.func @transform_0(%arg0: i32) -> (i32, i32) {
    %c0_i32 = arith.constant 0 : i32
    %c0_i32_0 = arith.constant 0 : i32
    return %arg0, %c0_i32 : i32, i32
  }
  func.func @transform_1(%arg0: i32) -> (i32, i32) {
    %c0_i32 = arith.constant 0 : i32
    %c0_i32_0 = arith.constant 0 : i32
    %c0_i32_1 = arith.constant 0 : i32
    return %c0_i32, %c0_i32_0 : i32, i32
  }
  func.func @transform_2(%arg0: i32) -> (i32, i32) {
    %c0_i32 = arith.constant 0 : i32
    %c0_i32_0 = arith.constant 0 : i32
    %c0_i32_1 = arith.constant 0 : i32
    return %c0_i32, %c0_i32_0 : i32, i32
  }
  func.func @transform_3(%arg0: i32) -> (i32, i32) {
    %c0_i32 = arith.constant 0 : i32
    %c0_i32_0 = arith.constant 0 : i32
    %c0_i32_1 = arith.constant 0 : i32
    return %c0_i32, %c0_i32_0 : i32, i32
  }
  func.func @transform_4(%arg0: i32) -> (i32, i32) {
    %c0_i32 = arith.constant 0 : i32
    %c0_i32_0 = arith.constant 0 : i32
    %c0_i32_1 = arith.constant 0 : i32
    return %c0_i32, %c0_i32_0 : i32, i32
  }
  func.func @transform_5(%arg0: i32) -> (i32, i32) {
    %c0_i32 = arith.constant 0 : i32
    %c0_i32_0 = arith.constant 0 : i32
    %c0_i32_1 = arith.constant 0 : i32
    return %c0_i32, %c0_i32_0 : i32, i32
  }
  func.func @transform_6(%arg0: i32) -> (i32, i32) {
    %c0_i32 = arith.constant 0 : i32
    %c0_i32_0 = arith.constant 0 : i32
    return %arg0, %c0_i32 : i32, i32
  }
}

</mosaic_0001>

<llo_original>
// kernel: _forward_impl.1
$region0: #{_forward_impl.1}
  #allocation0 [shape = 'u32[]', space=smem, size = 0x4, offset = 0x4, fixed_abs, tag = 'smem constant byte address 0x4 - core index']
  #allocation1 [shape = 'u32[144,128]{1,0:T(1,128)}', space=vmem, size = 0x12000, scoped, tag = 'internal scratch']
  %s0 = inlined_call_operand.vmem [shape: bf16[8,768], index: 0, kind: input, shape index: {}]
  %s1 = inlined_call_operand.hbm [shape: bf16[768,256], index: 1, kind: input, shape index: {}]
  %s2 = inlined_call_operand.vmem [shape: f32[1,256], index: 2, kind: input, shape index: {}]
  %s3 = inlined_call_operand.hbm [shape: bf16[256,256], index: 3, kind: input, shape index: {}]
  %s4 = inlined_call_operand.vmem [shape: f32[1,256], index: 4, kind: input, shape index: {}]
  %s5 = inlined_call_operand.hbm [shape: bf16[256,128], index: 5, kind: input, shape index: {}]
  %s6 = inlined_call_operand.vmem [shape: f32[8,128], index: 6, kind: output, shape index: {}]
  %s7 = sld [smem:[#allocation0]]
  $region46: #{_forward_impl.1} parent=0
    _
  %s9 = ssub.s32 1, %s7
  %s10 = scalar_select 0, %s9, %s7
  $region1: #{_forward_impl.1} parent=0
    #allocation2 [shape = 'u8[393216]{0}', space=vmem, size = 0x60000, scoped, tag = 'input window, operand 1, single buffered']
    #allocation3 [shape = 's32[1]{0}', space=sflag, size = 0x4, scoped, tag = 'scoped memory for _forward_impl.1']
    #allocation4 [shape = 'u8[131072]{0}', space=vmem, size = 0x20000, scoped, tag = 'input window, operand 3, single buffered']
    #allocation5 [shape = 's32[1]{0}', space=sflag, size = 0x4, scoped, tag = 'scoped memory for _forward_impl.1']
    #allocation6 [shape = 'u8[65536]{0}', space=vmem, size = 0x10000, scoped, tag = 'input window, operand 5, single buffered']
    %11 = vsyncpa [#allocation3], 0
    %12 = vsyncpa [#allocation5], 0
    // Predicated region
    $region2: #{_forward_impl.1} parent=1 // pred_check
      _
    $region3: #{_forward_impl.1} parent=1 // pred_check_branch
      %14 = sbr.rel (0) target = $region5
    $region4: #{_forward_impl.1} parent=1 // pred_region
      _
    $region5: #{_forward_impl.1} parent=1 // pred_fallthru
      _
    // Predicated region
    $region6: #{_forward_impl.1} parent=1 // pred_check
      _
    $region7: #{_forward_impl.1} parent=1 // pred_check_branch
      %16 = sbr.rel (0) target = $region9
    $region8: #{_forward_impl.1} parent=1 // pred_region
      %s18 = ssub.s32 12288, 12288
      %19 = vsyncadd [#allocation3], %s18
      %s20 = sshll.u32 [#allocation2], 4
      %s21 = int_to_ptr.vmem [resolvable:$true] %s20
      %26 = dma.hbm_to_vmem [thread:$0]  %s1, 12288, %s21, [#allocation3], 128, 128, 8
    $region9: #{_forward_impl.1} parent=1 // pred_fallthru
      _
    // Predicated region
    $region10: #{_forward_impl.1} parent=1 // pred_check
      _
    $region11: #{_forward_impl.1} parent=1 // pred_check_branch
      %28 = sbr.rel (0) target = $region13
    $region12: #{_forward_impl.1} parent=1 // pred_region
      _
    $region13: #{_forward_impl.1} parent=1 // pred_fallthru
      _
    // Predicated region
    $region14: #{_forward_impl.1} parent=1 // pred_check
      _
    $region15: #{_forward_impl.1} parent=1 // pred_check_branch
      %30 = sbr.rel (0) target = $region17
    $region16: #{_forward_impl.1} parent=1 // pred_region
      %s32 = ssub.s32 4096, 4096
      %33 = vsyncadd [#allocation5], %s32
      %s34 = sshll.u32 [#allocation4], 4
      %s35 = int_to_ptr.vmem [resolvable:$true] %s34
      %40 = dma.hbm_to_vmem [thread:$0]  %s3, 4096, %s35, [#allocation5], 128, 128, 8
    $region17: #{_forward_impl.1} parent=1 // pred_fallthru
      _
    // Predicated region
    $region18: #{_forward_impl.1} parent=1 // pred_check
      _
    $region19: #{_forward_impl.1} parent=1 // pred_check_branch
      %42 = sbr.rel (0) target = $region21
    $region20: #{_forward_impl.1} parent=1 // pred_region
      _
    $region21: #{_forward_impl.1} parent=1 // pred_fallthru
      _
    // Predicated region
    $region22: #{_forward_impl.1} parent=1 // pred_check
      _
    $region23: #{_forward_impl.1} parent=1 // pred_check_branch
      %44 = sbr.rel (0) target = $region25
    $region24: #{_forward_impl.1} parent=1 // pred_region
      %s46 = ssub.s32 2048, 2048
      %47 = vsyncadd [#allocation5], %s46
      %s48 = sshll.u32 [#allocation6], 4
      %s49 = int_to_ptr.vmem [resolvable:$true] %s48
      %54 = dma.hbm_to_vmem [thread:$0]  %s5, 2048, %s49, [#allocation5], 64, 64, 4
    $region25: #{_forward_impl.1} parent=1 // pred_fallthru
      _
    // Predicated region
    $region26: #{_forward_impl.1} parent=1 // pred_check
      _
    $region27: #{_forward_impl.1} parent=1 // pred_check_branch
      %56 = sbr.rel (0) target = $region29
    $region28: #{_forward_impl.1} parent=1 // pred_region
      %57 = dma.done [#allocation3], 12288
    $region29: #{_forward_impl.1} parent=1 // pred_fallthru
      _
    // Predicated region
    $region30: #{_forward_impl.1} parent=1 // pred_check
      _
    $region31: #{_forward_impl.1} parent=1 // pred_check_branch
      %59 = sbr.rel (0) target = $region33
    $region32: #{_forward_impl.1} parent=1 // pred_region
      %60 = dma.done [#allocation5], 4096
    $region33: #{_forward_impl.1} parent=1 // pred_fallthru
      _
    // Predicated region
    $region34: #{_forward_impl.1} parent=1 // pred_check
      _
    $region35: #{_forward_impl.1} parent=1 // pred_check_branch
      %62 = sbr.rel (0) target = $region37
    $region36: #{_forward_impl.1} parent=1 // pred_region
      %63 = dma.done [#allocation5], 2048
    $region37: #{_forward_impl.1} parent=1 // pred_fallthru
      _
    %v65 = vld [vmem:[%s0] sm:$0xff]
    %v66 = vld [vmem:[%s0 + $0x8] sm:$0xff]
    %v67 = vld [vmem:[%s0 + $0x10] sm:$0xff]
    %v68 = vld [vmem:[#allocation2] sm:$0xff]
    %v69 = vld [vmem:[#allocation2 + $0x8] sm:$0xff]
    %v70 = vld [vmem:[#allocation2 + $0x10] sm:$0xff]
    %v71 = vld [vmem:[#allocation2 + $0x18] sm:$0xff]
    %v72 = vld [vmem:[#allocation2 + $0x20] sm:$0xff]
    %v73 = vld [vmem:[#allocation2 + $0x28] sm:$0xff]
    %v74 = vld [vmem:[#allocation2 + $0x30] sm:$0xff]
    %v75 = vld [vmem:[#allocation2 + $0x38] sm:$0xff]
    %v76 = vld [vmem:[#allocation2 + $0x40] sm:$0xff]
    %v77 = vld [vmem:[#allocation2 + $0x48] sm:$0xff]
    %v78 = vld [vmem:[#allocation2 + $0x50] sm:$0xff]
    %v79 = vld [vmem:[#allocation2 + $0x58] sm:$0xff]
    %v80 = vld [vmem:[#allocation2 + $0x60] sm:$0xff]
    %v81 = vld [vmem:[#allocation2 + $0x68] sm:$0xff]
    %v82 = vld [vmem:[#allocation2 + $0x70] sm:$0xff]
    %v83 = vld [vmem:[#allocation2 + $0x78] sm:$0xff]
    %v84 = vld [vmem:[#allocation2 + $0x80] sm:$0xff]
    %v85 = vld [vmem:[#allocation2 + $0x88] sm:$0xff]
    %v86 = vld [vmem:[#allocation2 + $0x90] sm:$0xff]
    %v87 = vld [vmem:[#allocation2 + $0x98] sm:$0xff]
    %v88 = vld [vmem:[#allocation2 + $0xa0] sm:$0xff]
    %v89 = vld [vmem:[#allocation2 + $0xa8] sm:$0xff]
    %v90 = vld [vmem:[#allocation2 + $0xb0] sm:$0xff]
    %v91 = vld [vmem:[#allocation2 + $0xb8] sm:$0xff]
    %v92 = vld [vmem:[#allocation2 + $0xc0] sm:$0xff]
    %v93 = vld [vmem:[#allocation2 + $0xc8] sm:$0xff]
    %v94 = vld [vmem:[#allocation2 + $0xd0] sm:$0xff]
    %v95 = vld [vmem:[#allocation2 + $0xd8] sm:$0xff]
    %v96 = vld [vmem:[#allocation2 + $0xe0] sm:$0xff]
    %v97 = vld [vmem:[#allocation2 + $0xe8] sm:$0xff]
    %v98 = vld [vmem:[#allocation2 + $0xf0] sm:$0xff]
    %v99 = vld [vmem:[#allocation2 + $0xf8] sm:$0xff]
    %v100 = vld [vmem:[#allocation2 + $0x100] sm:$0xff]
    %v101 = vld [vmem:[#allocation2 + $0x108] sm:$0xff]
    %v102 = vld [vmem:[#allocation2 + $0x110] sm:$0xff]
    %v103 = vld [vmem:[#allocation2 + $0x118] sm:$0xff]
    %v104 = vld [vmem:[#allocation2 + $0x120] sm:$0xff]
    %v105 = vld [vmem:[#allocation2 + $0x128] sm:$0xff]
    %v106 = vld [vmem:[#allocation2 + $0x130] sm:$0xff]
    %v107 = vld [vmem:[#allocation2 + $0x138] sm:$0xff]
    %v108 = vld [vmem:[#allocation2 + $0x140] sm:$0xff]
    %v109 = vld [vmem:[#allocation2 + $0x148] sm:$0xff]
    %v110 = vld [vmem:[#allocation2 + $0x150] sm:$0xff]
    %v111 = vld [vmem:[#allocation2 + $0x158] sm:$0xff]
    %v112 = vld [vmem:[#allocation2 + $0x160] sm:$0xff]
    %v113 = vld [vmem:[#allocation2 + $0x168] sm:$0xff]
    %v114 = vld [vmem:[#allocation2 + $0x170] sm:$0xff]
    %v115 = vld [vmem:[#allocation2 + $0x178] sm:$0xff]
    %v116 = vld [vmem:[#allocation2 + $0x180] sm:$0xff]
    %v117 = vld [vmem:[#allocation2 + $0x188] sm:$0xff]
    %v118 = vld [vmem:[#allocation2 + $0x190] sm:$0xff]
    %v119 = vld [vmem:[#allocation2 + $0x198] sm:$0xff]
    %v120 = vld [vmem:[#allocation2 + $0x1a0] sm:$0xff]
    %v121 = vld [vmem:[#allocation2 + $0x1a8] sm:$0xff]
    %v122 = vld [vmem:[#allocation2 + $0x1b0] sm:$0xff]
    %v123 = vld [vmem:[#allocation2 + $0x1b8] sm:$0xff]
    %v124 = vld [vmem:[#allocation2 + $0x1c0] sm:$0xff]
    %v125 = vld [vmem:[#allocation2 + $0x1c8] sm:$0xff]
    %v126 = vld [vmem:[#allocation2 + $0x1d0] sm:$0xff]
    %v127 = vld [vmem:[#allocation2 + $0x1d8] sm:$0xff]
    %v128 = vld [vmem:[#allocation2 + $0x1e0] sm:$0xff]
    %v129 = vld [vmem:[#allocation2 + $0x1e8] sm:$0xff]
    %v130 = vld [vmem:[#allocation2 + $0x1f0] sm:$0xff]
    %v131 = vld [vmem:[#allocation2 + $0x1f8] sm:$0xff]
    %v132 = vld [vmem:[#allocation2 + $0x200] sm:$0xff]
    %v133 = vld [vmem:[#allocation2 + $0x208] sm:$0xff]
    %v134 = vld [vmem:[#allocation2 + $0x210] sm:$0xff]
    %v135 = vld [vmem:[#allocation2 + $0x218] sm:$0xff]
    %v136 = vld [vmem:[#allocation2 + $0x220] sm:$0xff]
    %v137 = vld [vmem:[#allocation2 + $0x228] sm:$0xff]
    %v138 = vld [vmem:[#allocation2 + $0x230] sm:$0xff]
    %v139 = vld [vmem:[#allocation2 + $0x238] sm:$0xff]
    %v140 = vld [vmem:[#allocation2 + $0x240] sm:$0xff]
    %v141 = vld [vmem:[#allocation2 + $0x248] sm:$0xff]
    %v142 = vld [vmem:[#allocation2 + $0x250] sm:$0xff]
    %v143 = vld [vmem:[#allocation2 + $0x258] sm:$0xff]
    %v144 = vld [vmem:[#allocation2 + $0x260] sm:$0xff]
    %v145 = vld [vmem:[#allocation2 + $0x268] sm:$0xff]
    %v146 = vld [vmem:[#allocation2 + $0x270] sm:$0xff]
    %v147 = vld [vmem:[#allocation2 + $0x278] sm:$0xff]
    %v148 = vld [vmem:[#allocation2 + $0x280] sm:$0xff]
    %v149 = vld [vmem:[#allocation2 + $0x288] sm:$0xff]
    %v150 = vld [vmem:[#allocation2 + $0x290] sm:$0xff]
    %v151 = vld [vmem:[#allocation2 + $0x298] sm:$0xff]
    %v152 = vld [vmem:[#allocation2 + $0x2a0] sm:$0xff]
    %v153 = vld [vmem:[#allocation2 + $0x2a8] sm:$0xff]
    %v154 = vld [vmem:[#allocation2 + $0x2b0] sm:$0xff]
    %v155 = vld [vmem:[#allocation2 + $0x2b8] sm:$0xff]
    %v156 = vld [vmem:[#allocation2 + $0x2c0] sm:$0xff]
    %v157 = vld [vmem:[#allocation2 + $0x2c8] sm:$0xff]
    %v158 = vld [vmem:[#allocation2 + $0x2d0] sm:$0xff]
    %v159 = vld [vmem:[#allocation2 + $0x2d8] sm:$0xff]
    %v160 = vld [vmem:[#allocation2 + $0x2e0] sm:$0xff]
    %v161 = vld [vmem:[#allocation2 + $0x2e8] sm:$0xff]
    %v162 = vld [vmem:[#allocation2 + $0x2f0] sm:$0xff]
    %v163 = vld [vmem:[#allocation2 + $0x2f8] sm:$0xff]
    %v164 = vld [vmem:[%s2] sm:$0x3]
    %v166 = vlaneseq
    %v167 = vshrl.u32 %v166, 7
    %v168 = vsub.s32 0, %v167
    %v169 = vrot.slane %v164, %v168
    %v170 = vlaneseq
    %v171 = vshrl.u32 %v170, 7
    %v172 = vsub.s32 1, %v171
    %v173 = vrot.slane %v164, %v172
    %v179 = vunpack.c.l.b16 %v65
    %v180 = vunpack.c.h.b16 %v65
    %v181 = vunpack.c.l.b16 %v66
    %v182 = vunpack.c.h.b16 %v66
    %v183 = vunpack.c.l.b16 %v67
    %v184 = vunpack.c.h.b16 %v67
    %v185 = vpack.c.b16 %v179, %v179
    %v186 = vpack.c.b16 %v180, %v180
    %v187 = vpack.c.b16 %v181, %v181
    %v188 = vpack.c.b16 %v182, %v182
    %v189 = vpack.c.b16 %v183, %v183
    %v190 = vpack.c.b16 %v184, %v184
    %v293 = vunpack.c.l.b16 %v68
    %v294 = vunpack.c.h.b16 %v68
    %v295 = vunpack.c.l.b16 %v69
    %v296 = vunpack.c.h.b16 %v69
    %v297 = vunpack.c.l.b16 %v70
    %v298 = vunpack.c.h.b16 %v70
    %v299 = vunpack.c.l.b16 %v71
    %v300 = vunpack.c.h.b16 %v71
    %v301 = vunpack.c.l.b16 %v72
    %v302 = vunpack.c.h.b16 %v72
    %v303 = vunpack.c.l.b16 %v73
    %v304 = vunpack.c.h.b16 %v73
    %v305 = vunpack.c.l.b16 %v74
    %v306 = vunpack.c.h.b16 %v74
    %v307 = vunpack.c.l.b16 %v75
    %v308 = vunpack.c.h.b16 %v75
    %v309 = vunpack.c.l.b16 %v76
    %v310 = vunpack.c.h.b16 %v76
    %v311 = vunpack.c.l.b16 %v77
    %v312 = vunpack.c.h.b16 %v77
    %v313 = vunpack.c.l.b16 %v78
    %v314 = vunpack.c.h.b16 %v78
    %v315 = vunpack.c.l.b16 %v79
    %v316 = vunpack.c.h.b16 %v79
    %v317 = vunpack.c.l.b16 %v80
    %v318 = vunpack.c.h.b16 %v80
    %v319 = vunpack.c.l.b16 %v81
    %v320 = vunpack.c.h.b16 %v81
    %v321 = vunpack.c.l.b16 %v82
    %v322 = vunpack.c.h.b16 %v82
    %v323 = vunpack.c.l.b16 %v83
    %v324 = vunpack.c.h.b16 %v83
    %v325 = vunpack.c.l.b16 %v84
    %v326 = vunpack.c.h.b16 %v84
    %v327 = vunpack.c.l.b16 %v85
    %v328 = vunpack.c.h.b16 %v85
    %v329 = vunpack.c.l.b16 %v86
    %v330 = vunpack.c.h.b16 %v86
    %v331 = vunpack.c.l.b16 %v87
    %v332 = vunpack.c.h.b16 %v87
    %v333 = vunpack.c.l.b16 %v88
    %v334 = vunpack.c.h.b16 %v88
    %v335 = vunpack.c.l.b16 %v89
    %v336 = vunpack.c.h.b16 %v89
    %v337 = vunpack.c.l.b16 %v90
    %v338 = vunpack.c.h.b16 %v90
    %v339 = vunpack.c.l.b16 %v91
    %v340 = vunpack.c.h.b16 %v91
    %v341 = vunpack.c.l.b16 %v92
    %v342 = vunpack.c.h.b16 %v92
    %v343 = vunpack.c.l.b16 %v93
    %v344 = vunpack.c.h.b16 %v93
    %v345 = vunpack.c.l.b16 %v94
    %v346 = vunpack.c.h.b16 %v94
    %v347 = vunpack.c.l.b16 %v95
    %v348 = vunpack.c.h.b16 %v95
    %v349 = vunpack.c.l.b16 %v96
    %v350 = vunpack.c.h.b16 %v96
    %v351 = vunpack.c.l.b16 %v97
    %v352 = vunpack.c.h.b16 %v97
    %v353 = vunpack.c.l.b16 %v98
    %v354 = vunpack.c.h.b16 %v98
    %v355 = vunpack.c.l.b16 %v99
    %v356 = vunpack.c.h.b16 %v99
    %v357 = vunpack.c.l.b16 %v100
    %v358 = vunpack.c.h.b16 %v100
    %v359 = vunpack.c.l.b16 %v101
    %v360 = vunpack.c.h.b16 %v101
    %v361 = vunpack.c.l.b16 %v102
    %v362 = vunpack.c.h.b16 %v102
    %v363 = vunpack.c.l.b16 %v103
    %v364 = vunpack.c.h.b16 %v103
    %v365 = vunpack.c.l.b16 %v104
    %v366 = vunpack.c.h.b16 %v104
    %v367 = vunpack.c.l.b16 %v105
    %v368 = vunpack.c.h.b16 %v105
    %v369 = vunpack.c.l.b16 %v106
    %v370 = vunpack.c.h.b16 %v106
    %v371 = vunpack.c.l.b16 %v107
    %v372 = vunpack.c.h.b16 %v107
    %v373 = vunpack.c.l.b16 %v108
    %v374 = vunpack.c.h.b16 %v108
    %v375 = vunpack.c.l.b16 %v109
    %v376 = vunpack.c.h.b16 %v109
    %v377 = vunpack.c.l.b16 %v110
    %v378 = vunpack.c.h.b16 %v110
    %v379 = vunpack.c.l.b16 %v111
    %v380 = vunpack.c.h.b16 %v111
    %v381 = vunpack.c.l.b16 %v112
    %v382 = vunpack.c.h.b16 %v112
    %v383 = vunpack.c.l.b16 %v113
    %v384 = vunpack.c.h.b16 %v113
    %v385 = vunpack.c.l.b16 %v114
    %v386 = vunpack.c.h.b16 %v114
    %v387 = vunpack.c.l.b16 %v115
    %v388 = vunpack.c.h.b16 %v115
    %v389 = vunpack.c.l.b16 %v116
    %v390 = vunpack.c.h.b16 %v116
    %v391 = vunpack.c.l.b16 %v117
    %v392 = vunpack.c.h.b16 %v117
    %v393 = vunpack.c.l.b16 %v118
    %v394 = vunpack.c.h.b16 %v118
    %v395 = vunpack.c.l.b16 %v119
    %v396 = vunpack.c.h.b16 %v119
    %v397 = vunpack.c.l.b16 %v120
    %v398 = vunpack.c.h.b16 %v120
    %v399 = vunpack.c.l.b16 %v121
    %v400 = vunpack.c.h.b16 %v121
    %v401 = vunpack.c.l.b16 %v122
    %v402 = vunpack.c.h.b16 %v122
    %v403 = vunpack.c.l.b16 %v123
    %v404 = vunpack.c.h.b16 %v123
    %v405 = vunpack.c.l.b16 %v124
    %v406 = vunpack.c.h.b16 %v124
    %v407 = vunpack.c.l.b16 %v125
    %v408 = vunpack.c.h.b16 %v125
    %v409 = vunpack.c.l.b16 %v126
    %v410 = vunpack.c.h.b16 %v126
    %v411 = vunpack.c.l.b16 %v127
    %v412 = vunpack.c.h.b16 %v127
    %v413 = vunpack.c.l.b16 %v128
    %v414 = vunpack.c.h.b16 %v128
    %v415 = vunpack.c.l.b16 %v129
    %v416 = vunpack.c.h.b16 %v129
    %v417 = vunpack.c.l.b16 %v130
    %v418 = vunpack.c.h.b16 %v130
    %v419 = vunpack.c.l.b16 %v131
    %v420 = vunpack.c.h.b16 %v131
    %v421 = vunpack.c.l.b16 %v132
    %v422 = vunpack.c.h.b16 %v132
    %v423 = vunpack.c.l.b16 %v133
    %v424 = vunpack.c.h.b16 %v133
    %v425 = vunpack.c.l.b16 %v134
    %v426 = vunpack.c.h.b16 %v134
    %v427 = vunpack.c.l.b16 %v135
    %v428 = vunpack.c.h.b16 %v135
    %v429 = vunpack.c.l.b16 %v136
    %v430 = vunpack.c.h.b16 %v136
    %v431 = vunpack.c.l.b16 %v137
    %v432 = vunpack.c.h.b16 %v137
    %v433 = vunpack.c.l.b16 %v138
    %v434 = vunpack.c.h.b16 %v138
    %v435 = vunpack.c.l.b16 %v139
    %v436 = vunpack.c.h.b16 %v139
    %v437 = vunpack.c.l.b16 %v140
    %v438 = vunpack.c.h.b16 %v140
    %v439 = vunpack.c.l.b16 %v141
    %v440 = vunpack.c.h.b16 %v141
    %v441 = vunpack.c.l.b16 %v142
    %v442 = vunpack.c.h.b16 %v142
    %v443 = vunpack.c.l.b16 %v143
    %v444 = vunpack.c.h.b16 %v143
    %v445 = vunpack.c.l.b16 %v144
    %v446 = vunpack.c.h.b16 %v144
    %v447 = vunpack.c.l.b16 %v145
    %v448 = vunpack.c.h.b16 %v145
    %v449 = vunpack.c.l.b16 %v146
    %v450 = vunpack.c.h.b16 %v146
    %v451 = vunpack.c.l.b16 %v147
    %v452 = vunpack.c.h.b16 %v147
    %v453 = vunpack.c.l.b16 %v148
    %v454 = vunpack.c.h.b16 %v148
    %v455 = vunpack.c.l.b16 %v149
    %v456 = vunpack.c.h.b16 %v149
    %v457 = vunpack.c.l.b16 %v150
    %v458 = vunpack.c.h.b16 %v150
    %v459 = vunpack.c.l.b16 %v151
    %v460 = vunpack.c.h.b16 %v151
    %v461 = vunpack.c.l.b16 %v152
    %v462 = vunpack.c.h.b16 %v152
    %v463 = vunpack.c.l.b16 %v153
    %v464 = vunpack.c.h.b16 %v153
    %v465 = vunpack.c.l.b16 %v154
    %v466 = vunpack.c.h.b16 %v154
    %v467 = vunpack.c.l.b16 %v155
    %v468 = vunpack.c.h.b16 %v155
    %v469 = vunpack.c.l.b16 %v156
    %v470 = vunpack.c.h.b16 %v156
    %v471 = vunpack.c.l.b16 %v157
    %v472 = vunpack.c.h.b16 %v157
    %v473 = vunpack.c.l.b16 %v158
    %v474 = vunpack.c.h.b16 %v158
    %v475 = vunpack.c.l.b16 %v159
    %v476 = vunpack.c.h.b16 %v159
    %v477 = vunpack.c.l.b16 %v160
    %v478 = vunpack.c.h.b16 %v160
    %v479 = vunpack.c.l.b16 %v161
    %v480 = vunpack.c.h.b16 %v161
    %v481 = vunpack.c.l.b16 %v162
    %v482 = vunpack.c.h.b16 %v162
    %v483 = vunpack.c.l.b16 %v163
    %v484 = vunpack.c.h.b16 %v163
    %v485 = vpack.c.b16 %v295, %v293
    %v486 = vpack.c.b16 %v296, %v294
    %v487 = vpack.c.b16 %v299, %v297
    %v488 = vpack.c.b16 %v300, %v298
    %v489 = vpack.c.b16 %v303, %v301
    %v490 = vpack.c.b16 %v304, %v302
    %v491 = vpack.c.b16 %v307, %v305
    %v492 = vpack.c.b16 %v308, %v306
    %v493 = vpack.c.b16 %v311, %v309
    %v494 = vpack.c.b16 %v312, %v310
    %v495 = vpack.c.b16 %v315, %v313
    %v496 = vpack.c.b16 %v316, %v314
    %v497 = vpack.c.b16 %v319, %v317
    %v498 = vpack.c.b16 %v320, %v318
    %v499 = vpack.c.b16 %v323, %v321
    %v500 = vpack.c.b16 %v324, %v322
    %v501 = vpack.c.b16 %v327, %v325
    %v502 = vpack.c.b16 %v328, %v326
    %v503 = vpack.c.b16 %v331, %v329
    %v504 = vpack.c.b16 %v332, %v330
    %v505 = vpack.c.b16 %v335, %v333
    %v506 = vpack.c.b16 %v336, %v334
    %v507 = vpack.c.b16 %v339, %v337
    %v508 = vpack.c.b16 %v340, %v338
    %v509 = vpack.c.b16 %v343, %v341
    %v510 = vpack.c.b16 %v344, %v342
    %v511 = vpack.c.b16 %v347, %v345
    %v512 = vpack.c.b16 %v348, %v346
    %v513 = vpack.c.b16 %v351, %v349
    %v514 = vpack.c.b16 %v352, %v350
    %v515 = vpack.c.b16 %v355, %v353
    %v516 = vpack.c.b16 %v356, %v354
    %v517 = vpack.c.b16 %v359, %v357
    %v518 = vpack.c.b16 %v360, %v358
    %v519 = vpack.c.b16 %v363, %v361
    %v520 = vpack.c.b16 %v364, %v362
    %v521 = vpack.c.b16 %v367, %v365
    %v522 = vpack.c.b16 %v368, %v366
    %v523 = vpack.c.b16 %v371, %v369
    %v524 = vpack.c.b16 %v372, %v370
    %v525 = vpack.c.b16 %v375, %v373
    %v526 = vpack.c.b16 %v376, %v374
    %v527 = vpack.c.b16 %v379, %v377
    %v528 = vpack.c.b16 %v380, %v378
    %v529 = vpack.c.b16 %v383, %v381
    %v530 = vpack.c.b16 %v384, %v382
    %v531 = vpack.c.b16 %v387, %v385
    %v532 = vpack.c.b16 %v388, %v386
    %v533 = vpack.c.b16 %v391, %v389
    %v534 = vpack.c.b16 %v392, %v390
    %v535 = vpack.c.b16 %v395, %v393
    %v536 = vpack.c.b16 %v396, %v394
    %v537 = vpack.c.b16 %v399, %v397
    %v538 = vpack.c.b16 %v400, %v398
    %v539 = vpack.c.b16 %v403, %v401
    %v540 = vpack.c.b16 %v404, %v402
    %v541 = vpack.c.b16 %v407, %v405
    %v542 = vpack.c.b16 %v408, %v406
    %v543 = vpack.c.b16 %v411, %v409
    %v544 = vpack.c.b16 %v412, %v410
    %v545 = vpack.c.b16 %v415, %v413
    %v546 = vpack.c.b16 %v416, %v414
    %v547 = vpack.c.b16 %v419, %v417
    %v548 = vpack.c.b16 %v420, %v418
    %v549 = vpack.c.b16 %v423, %v421
    %v550 = vpack.c.b16 %v424, %v422
    %v551 = vpack.c.b16 %v427, %v425
    %v552 = vpack.c.b16 %v428, %v426
    %v553 = vpack.c.b16 %v431, %v429
    %v554 = vpack.c.b16 %v432, %v430
    %v555 = vpack.c.b16 %v435, %v433
    %v556 = vpack.c.b16 %v436, %v434
    %v557 = vpack.c.b16 %v439, %v437
    %v558 = vpack.c.b16 %v440, %v438
    %v559 = vpack.c.b16 %v443, %v441
    %v560 = vpack.c.b16 %v444, %v442
    %v561 = vpack.c.b16 %v447, %v445
    %v562 = vpack.c.b16 %v448, %v446
    %v563 = vpack.c.b16 %v451, %v449
    %v564 = vpack.c.b16 %v452, %v450
    %v565 = vpack.c.b16 %v455, %v453
    %v566 = vpack.c.b16 %v456, %v454
    %v567 = vpack.c.b16 %v459, %v457
    %v568 = vpack.c.b16 %v460, %v458
    %v569 = vpack.c.b16 %v463, %v461
    %v570 = vpack.c.b16 %v464, %v462
    %v571 = vpack.c.b16 %v467, %v465
    %v572 = vpack.c.b16 %v468, %v466
    %v573 = vpack.c.b16 %v471, %v469
    %v574 = vpack.c.b16 %v472, %v470
    %v575 = vpack.c.b16 %v475, %v473
    %v576 = vpack.c.b16 %v476, %v474
    %v577 = vpack.c.b16 %v479, %v477
    %v578 = vpack.c.b16 %v480, %v478
    %v579 = vpack.c.b16 %v483, %v481
    %v580 = vpack.c.b16 %v484, %v482
    %677 = vmatprep.subr.bf16.mxu0 %v486
    %678 = vmatpush1.bf16.msra.mxu0 %v485
    %679 = vmatprep.subr.bf16.mxu0 %v488
    %680 = vmatpush1.bf16.msra.mxu0 %v487
    %681 = vmatprep.subr.bf16.mxu0 %v490
    %682 = vmatpush1.bf16.msra.mxu0 %v489
    %683 = vmatprep.subr.bf16.mxu0 %v492
    %684 = vmatpush1.bf16.msra.mxu0 %v491
    %685 = vmatprep.subr.bf16.mxu0 %v494
    %686 = vmatpush1.bf16.msra.mxu0 %v493
    %687 = vmatprep.subr.bf16.mxu0 %v496
    %688 = vmatpush1.bf16.msra.mxu0 %v495
    %689 = vmatprep.subr.bf16.mxu0 %v498
    %690 = vmatpush1.bf16.msra.mxu0 %v497
    %691 = vmatprep.subr.bf16.mxu0 %v500
    %692 = vmatpush1.bf16.msra.mxu0 %v499
    %693 = vmatprep.subr.bf16.mxu0 %v502
    %694 = vmatpush1.bf16.msra.mxu0 %v501
    %695 = vmatprep.subr.bf16.mxu0 %v504
    %696 = vmatpush1.bf16.msra.mxu0 %v503
    %697 = vmatprep.subr.bf16.mxu0 %v506
    %698 = vmatpush1.bf16.msra.mxu0 %v505
    %699 = vmatprep.subr.bf16.mxu0 %v508
    %700 = vmatpush1.bf16.msra.mxu0 %v507
    %701 = vmatprep.subr.bf16.mxu0 %v510
    %702 = vmatpush1.bf16.msra.mxu0 %v509
    %703 = vmatprep.subr.bf16.mxu0 %v512
    %704 = vmatpush1.bf16.msra.mxu0 %v511
    %705 = vmatprep.subr.bf16.mxu0 %v514
    %706 = vmatpush1.bf16.msra.mxu0 %v513
    %707 = vmatprep.subr.bf16.mxu0 %v516
    %708 = vmatpush1.bf16.msra.mxu0 %v515
    %709 = vmatprep.mubr.bf16.mxu0 %v186
    %710 = vmatmul.mubr.bf16.gmra.mrb[0].mxu0 %v185
    %v711 = vpop.f32.mrb[0].mxu0
    %v712 = vadd.f32 %v169, %v711
    %v713 = vpop.f32.mrb[0].mxu0
    %v714 = vadd.f32 %v173, %v713
    %v715 = vpop.f32.mrb[0].mxu0
    %v716 = vpop.f32.mrb[0].mxu0
    %717 = vdwg.mxu0
    %718 = vmatprep.subr.bf16.mxu0 %v518
    %719 = vmatpush1.bf16.msra.mxu0 %v517
    %720 = vmatprep.subr.bf16.mxu0 %v520
    %721 = vmatpush1.bf16.msra.mxu0 %v519
    %722 = vmatprep.subr.bf16.mxu0 %v522
    %723 = vmatpush1.bf16.msra.mxu0 %v521
    %724 = vmatprep.subr.bf16.mxu0 %v524
    %725 = vmatpush1.bf16.msra.mxu0 %v523
    %726 = vmatprep.subr.bf16.mxu0 %v526
    %727 = vmatpush1.bf16.msra.mxu0 %v525
    %728 = vmatprep.subr.bf16.mxu0 %v528
    %729 = vmatpush1.bf16.msra.mxu0 %v527
    %730 = vmatprep.subr.bf16.mxu0 %v530
    %731 = vmatpush1.bf16.msra.mxu0 %v529
    %732 = vmatprep.subr.bf16.mxu0 %v532
    %733 = vmatpush1.bf16.msra.mxu0 %v531
    %734 = vmatprep.subr.bf16.mxu0 %v534
    %735 = vmatpush1.bf16.msra.mxu0 %v533
    %736 = vmatprep.subr.bf16.mxu0 %v536
    %737 = vmatpush1.bf16.msra.mxu0 %v535
    %738 = vmatprep.subr.bf16.mxu0 %v538
    %739 = vmatpush1.bf16.msra.mxu0 %v537
    %740 = vmatprep.subr.bf16.mxu0 %v540
    %741 = vmatpush1.bf16.msra.mxu0 %v539
    %742 = vmatprep.subr.bf16.mxu0 %v542
    %743 = vmatpush1.bf16.msra.mxu0 %v541
    %744 = vmatprep.subr.bf16.mxu0 %v544
    %745 = vmatpush1.bf16.msra.mxu0 %v543
    %746 = vmatprep.subr.bf16.mxu0 %v546
    %747 = vmatpush1.bf16.msra.mxu0 %v545
    %748 = vmatprep.subr.bf16.mxu0 %v548
    %749 = vmatpush1.bf16.msra.mxu0 %v547
    %750 = vmatprep.mubr.bf16.mxu0 %v188
    %751 = vmatmul.mubr.bf16.gmra.mrb[0].mxu0 %v187
    %v752 = vpop.f32.mrb[0].mxu0
    %v753 = vadd.f32 %v712, %v752
    %v754 = vpop.f32.mrb[0].mxu0
    %v755 = vadd.f32 %v714, %v754
    %v756 = vpop.f32.mrb[0].mxu0
    %v757 = vpop.f32.mrb[0].mxu0
    %758 = vdwg.mxu0
    %759 = vmatprep.subr.bf16.mxu0 %v550
    %760 = vmatpush1.bf16.msra.mxu0 %v549
    %761 = vmatprep.subr.bf16.mxu0 %v552
    %762 = vmatpush1.bf16.msra.mxu0 %v551
    %763 = vmatprep.subr.bf16.mxu0 %v554
    %764 = vmatpush1.bf16.msra.mxu0 %v553
    %765 = vmatprep.subr.bf16.mxu0 %v556
    %766 = vmatpush1.bf16.msra.mxu0 %v555
    %767 = vmatprep.subr.bf16.mxu0 %v558
    %768 = vmatpush1.bf16.msra.mxu0 %v557
    %769 = vmatprep.subr.bf16.mxu0 %v560
    %770 = vmatpush1.bf16.msra.mxu0 %v559
    %771 = vmatprep.subr.bf16.mxu0 %v562
    %772 = vmatpush1.bf16.msra.mxu0 %v561
    %773 = vmatprep.subr.bf16.mxu0 %v564
    %774 = vmatpush1.bf16.msra.mxu0 %v563
    %775 = vmatprep.subr.bf16.mxu0 %v566
    %776 = vmatpush1.bf16.msra.mxu0 %v565
    %777 = vmatprep.subr.bf16.mxu0 %v568
    %778 = vmatpush1.bf16.msra.mxu0 %v567
    %779 = vmatprep.subr.bf16.mxu0 %v570
    %780 = vmatpush1.bf16.msra.mxu0 %v569
    %781 = vmatprep.subr.bf16.mxu0 %v572
    %782 = vmatpush1.bf16.msra.mxu0 %v571
    %783 = vmatprep.subr.bf16.mxu0 %v574
    %784 = vmatpush1.bf16.msra.mxu0 %v573
    %785 = vmatprep.subr.bf16.mxu0 %v576
    %786 = vmatpush1.bf16.msra.mxu0 %v575
    %787 = vmatprep.subr.bf16.mxu0 %v578
    %788 = vmatpush1.bf16.msra.mxu0 %v577
    %789 = vmatprep.subr.bf16.mxu0 %v580
    %790 = vmatpush1.bf16.msra.mxu0 %v579
    %791 = vmatprep.mubr.bf16.mxu0 %v190
    %792 = vmatmul.mubr.bf16.gmra.mrb[0].mxu0 %v189
    %v793 = vpop.f32.mrb[0].mxu0
    %v794 = vadd.f32 %v753, %v793
    %v795 = vpop.f32.mrb[0].mxu0
    %v796 = vadd.f32 %v755, %v795
    %v797 = vpop.f32.mrb[0].mxu0
    %v798 = vpop.f32.mrb[0].mxu0
    %799 = vdwg.mxu0
    %v800 = vmax.f32 %v794, 0.0
    %v801 = vmax.f32 %v796, 0.0
    %v802 = vpack.c.bf16 %v800, %v800
    %v803 = vpack.c.bf16 %v801, %v801
    %v804 = vld [vmem:[#allocation4] sm:$0xff]
    %v805 = vld [vmem:[#allocation4 + $0x8] sm:$0xff]
    %v806 = vld [vmem:[#allocation4 + $0x10] sm:$0xff]
    %v807 = vld [vmem:[#allocation4 + $0x18] sm:$0xff]
    %v808 = vld [vmem:[#allocation4 + $0x20] sm:$0xff]
    %v809 = vld [vmem:[#allocation4 + $0x28] sm:$0xff]
    %v810 = vld [vmem:[#allocation4 + $0x30] sm:$0xff]
    %v811 = vld [vmem:[#allocation4 + $0x38] sm:$0xff]
    %v812 = vld [vmem:[#allocation4 + $0x40] sm:$0xff]
    %v813 = vld [vmem:[#allocation4 + $0x48] sm:$0xff]
    %v814 = vld [vmem:[#allocation4 + $0x50] sm:$0xff]
    %v815 = vld [vmem:[#allocation4 + $0x58] sm:$0xff]
    %v816 = vld [vmem:[#allocation4 + $0x60] sm:$0xff]
    %v817 = vld [vmem:[#allocation4 + $0x68] sm:$0xff]
    %v818 = vld [vmem:[#allocation4 + $0x70] sm:$0xff]
    %v819 = vld [vmem:[#allocation4 + $0x78] sm:$0xff]
    %v820 = vld [vmem:[#allocation4 + $0x80] sm:$0xff]
    %v821 = vld [vmem:[#allocation4 + $0x88] sm:$0xff]
    %v822 = vld [vmem:[#allocation4 + $0x90] sm:$0xff]
    %v823 = vld [vmem:[#allocation4 + $0x98] sm:$0xff]
    %v824 = vld [vmem:[#allocation4 + $0xa0] sm:$0xff]
    %v825 = vld [vmem:[#allocation4 + $0xa8] sm:$0xff]
    %v826 = vld [vmem:[#allocation4 + $0xb0] sm:$0xff]
    %v827 = vld [vmem:[#allocation4 + $0xb8] sm:$0xff]
    %v828 = vld [vmem:[#allocation4 + $0xc0] sm:$0xff]
    %v829 = vld [vmem:[#allocation4 + $0xc8] sm:$0xff]
    %v830 = vld [vmem:[#allocation4 + $0xd0] sm:$0xff]
    %v831 = vld [vmem:[#allocation4 + $0xd8] sm:$0xff]
    %v832 = vld [vmem:[#allocation4 + $0xe0] sm:$0xff]
    %v833 = vld [vmem:[#allocation4 + $0xe8] sm:$0xff]
    %v834 = vld [vmem:[#allocation4 + $0xf0] sm:$0xff]
    %v835 = vld [vmem:[#allocation4 + $0xf8] sm:$0xff]
    %v836 = vld [vmem:[%s4] sm:$0x3]
    %v838 = vlaneseq
    %v839 = vshrl.u32 %v838, 7
    %v840 = vsub.s32 0, %v839
    %v841 = vrot.slane %v836, %v840
    %v842 = vlaneseq
    %v843 = vshrl.u32 %v842, 7
    %v844 = vsub.s32 1, %v843
    %v845 = vrot.slane %v836, %v844
    %v880 = vunpack.c.l.b16 %v804
    %v881 = vunpack.c.h.b16 %v804
    %v882 = vunpack.c.l.b16 %v805
    %v883 = vunpack.c.h.b16 %v805
    %v884 = vunpack.c.l.b16 %v806
    %v885 = vunpack.c.h.b16 %v806
    %v886 = vunpack.c.l.b16 %v807
    %v887 = vunpack.c.h.b16 %v807
    %v888 = vunpack.c.l.b16 %v808
    %v889 = vunpack.c.h.b16 %v808
    %v890 = vunpack.c.l.b16 %v809
    %v891 = vunpack.c.h.b16 %v809
    %v892 = vunpack.c.l.b16 %v810
    %v893 = vunpack.c.h.b16 %v810
    %v894 = vunpack.c.l.b16 %v811
    %v895 = vunpack.c.h.b16 %v811
    %v896 = vunpack.c.l.b16 %v812
    %v897 = vunpack.c.h.b16 %v812
    %v898 = vunpack.c.l.b16 %v813
    %v899 = vunpack.c.h.b16 %v813
    %v900 = vunpack.c.l.b16 %v814
    %v901 = vunpack.c.h.b16 %v814
    %v902 = vunpack.c.l.b16 %v815
    %v903 = vunpack.c.h.b16 %v815
    %v904 = vunpack.c.l.b16 %v816
    %v905 = vunpack.c.h.b16 %v816
    %v906 = vunpack.c.l.b16 %v817
    %v907 = vunpack.c.h.b16 %v817
    %v908 = vunpack.c.l.b16 %v818
    %v909 = vunpack.c.h.b16 %v818
    %v910 = vunpack.c.l.b16 %v819
    %v911 = vunpack.c.h.b16 %v819
    %v912 = vunpack.c.l.b16 %v820
    %v913 = vunpack.c.h.b16 %v820
    %v914 = vunpack.c.l.b16 %v821
    %v915 = vunpack.c.h.b16 %v821
    %v916 = vunpack.c.l.b16 %v822
    %v917 = vunpack.c.h.b16 %v822
    %v918 = vunpack.c.l.b16 %v823
    %v919 = vunpack.c.h.b16 %v823
    %v920 = vunpack.c.l.b16 %v824
    %v921 = vunpack.c.h.b16 %v824
    %v922 = vunpack.c.l.b16 %v825
    %v923 = vunpack.c.h.b16 %v825
    %v924 = vunpack.c.l.b16 %v826
    %v925 = vunpack.c.h.b16 %v826
    %v926 = vunpack.c.l.b16 %v827
    %v927 = vunpack.c.h.b16 %v827
    %v928 = vunpack.c.l.b16 %v828
    %v929 = vunpack.c.h.b16 %v828
    %v930 = vunpack.c.l.b16 %v829
    %v931 = vunpack.c.h.b16 %v829
    %v932 = vunpack.c.l.b16 %v830
    %v933 = vunpack.c.h.b16 %v830
    %v934 = vunpack.c.l.b16 %v831
    %v935 = vunpack.c.h.b16 %v831
    %v936 = vunpack.c.l.b16 %v832
    %v937 = vunpack.c.h.b16 %v832
    %v938 = vunpack.c.l.b16 %v833
    %v939 = vunpack.c.h.b16 %v833
    %v940 = vunpack.c.l.b16 %v834
    %v941 = vunpack.c.h.b16 %v834
    %v942 = vunpack.c.l.b16 %v835
    %v943 = vunpack.c.h.b16 %v835
    %v944 = vpack.c.b16 %v882, %v880
    %v945 = vpack.c.b16 %v883, %v881
    %v946 = vpack.c.b16 %v886, %v884
    %v947 = vpack.c.b16 %v887, %v885
    %v948 = vpack.c.b16 %v890, %v888
    %v949 = vpack.c.b16 %v891, %v889
    %v950 = vpack.c.b16 %v894, %v892
    %v951 = vpack.c.b16 %v895, %v893
    %v952 = vpack.c.b16 %v898, %v896
    %v953 = vpack.c.b16 %v899, %v897
    %v954 = vpack.c.b16 %v902, %v900
    %v955 = vpack.c.b16 %v903, %v901
    %v956 = vpack.c.b16 %v906, %v904
    %v957 = vpack.c.b16 %v907, %v905
    %v958 = vpack.c.b16 %v910, %v908
    %v959 = vpack.c.b16 %v911, %v909
    %v960 = vpack.c.b16 %v914, %v912
    %v961 = vpack.c.b16 %v915, %v913
    %v962 = vpack.c.b16 %v918, %v916
    %v963 = vpack.c.b16 %v919, %v917
    %v964 = vpack.c.b16 %v922, %v920
    %v965 = vpack.c.b16 %v923, %v921
    %v966 = vpack.c.b16 %v926, %v924
    %v967 = vpack.c.b16 %v927, %v925
    %v968 = vpack.c.b16 %v930, %v928
    %v969 = vpack.c.b16 %v931, %v929
    %v970 = vpack.c.b16 %v934, %v932
    %v971 = vpack.c.b16 %v935, %v933
    %v972 = vpack.c.b16 %v938, %v936
    %v973 = vpack.c.b16 %v939, %v937
    %v974 = vpack.c.b16 %v942, %v940
    %v975 = vpack.c.b16 %v943, %v941
    %1008 = vmatprep.subr.bf16.mxu0 %v945
    %1009 = vmatpush1.bf16.msra.mxu0 %v944
    %1010 = vmatprep.subr.bf16.mxu0 %v947
    %1011 = vmatpush1.bf16.msra.mxu0 %v946
    %1012 = vmatprep.subr.bf16.mxu0 %v949
    %1013 = vmatpush1.bf16.msra.mxu0 %v948
    %1014 = vmatprep.subr.bf16.mxu0 %v951
    %1015 = vmatpush1.bf16.msra.mxu0 %v950
    %1016 = vmatprep.subr.bf16.mxu0 %v953
    %1017 = vmatpush1.bf16.msra.mxu0 %v952
    %1018 = vmatprep.subr.bf16.mxu0 %v955
    %1019 = vmatpush1.bf16.msra.mxu0 %v954
    %1020 = vmatprep.subr.bf16.mxu0 %v957
    %1021 = vmatpush1.bf16.msra.mxu0 %v956
    %1022 = vmatprep.subr.bf16.mxu0 %v959
    %1023 = vmatpush1.bf16.msra.mxu0 %v958
    %1024 = vmatprep.subr.bf16.mxu0 %v961
    %1025 = vmatpush1.bf16.msra.mxu0 %v960
    %1026 = vmatprep.subr.bf16.mxu0 %v963
    %1027 = vmatpush1.bf16.msra.mxu0 %v962
    %1028 = vmatprep.subr.bf16.mxu0 %v965
    %1029 = vmatpush1.bf16.msra.mxu0 %v964
    %1030 = vmatprep.subr.bf16.mxu0 %v967
    %1031 = vmatpush1.bf16.msra.mxu0 %v966
    %1032 = vmatprep.subr.bf16.mxu0 %v969
    %1033 = vmatpush1.bf16.msra.mxu0 %v968
    %1034 = vmatprep.subr.bf16.mxu0 %v971
    %1035 = vmatpush1.bf16.msra.mxu0 %v970
    %1036 = vmatprep.subr.bf16.mxu0 %v973
    %1037 = vmatpush1.bf16.msra.mxu0 %v972
    %1038 = vmatprep.subr.bf16.mxu0 %v975
    %1039 = vmatpush1.bf16.msra.mxu0 %v974
    %1040 = vmatprep.mubr.bf16.mxu0 %v803
    %1041 = vmatmul.mubr.bf16.gmra.mrb[0].mxu0 %v802
    %v1042 = vpop.f32.mrb[0].mxu0
    %v1043 = vadd.f32 %v841, %v1042
    %v1044 = vpop.f32.mrb[0].mxu0
    %v1045 = vadd.f32 %v845, %v1044
    %v1046 = vpop.f32.mrb[0].mxu0
    %v1047 = vpop.f32.mrb[0].mxu0
    %1048 = vdwg.mxu0
    %v1049 = vmax.f32 %v1043, 0.0
    %v1050 = vmax.f32 %v1045, 0.0
    %v1051 = vpack.c.bf16 %v1049, %v1049
    %v1052 = vpack.c.bf16 %v1050, %v1050
    %v1053 = vld [vmem:[#allocation6] sm:$0xf]
    %v1054 = vld [vmem:[#allocation6 + $0x4] sm:$0xf]
    %v1055 = vld [vmem:[#allocation6 + $0x8] sm:$0xf]
    %v1056 = vld [vmem:[#allocation6 + $0xc] sm:$0xf]
    %v1057 = vld [vmem:[#allocation6 + $0x10] sm:$0xf]
    %v1058 = vld [vmem:[#allocation6 + $0x14] sm:$0xf]
    %v1059 = vld [vmem:[#allocation6 + $0x18] sm:$0xf]
    %v1060 = vld [vmem:[#allocation6 + $0x1c] sm:$0xf]
    %v1061 = vld [vmem:[#allocation6 + $0x20] sm:$0xf]
    %v1062 = vld [vmem:[#allocation6 + $0x24] sm:$0xf]
    %v1063 = vld [vmem:[#allocation6 + $0x28] sm:$0xf]
    %v1064 = vld [vmem:[#allocation6 + $0x2c] sm:$0xf]
    %v1065 = vld [vmem:[#allocation6 + $0x30] sm:$0xf]
    %v1066 = vld [vmem:[#allocation6 + $0x34] sm:$0xf]
    %v1067 = vld [vmem:[#allocation6 + $0x38] sm:$0xf]
    %v1068 = vld [vmem:[#allocation6 + $0x3c] sm:$0xf]
    %v1069 = vld [vmem:[#allocation6 + $0x40] sm:$0xf]
    %v1070 = vld [vmem:[#allocation6 + $0x44] sm:$0xf]
    %v1071 = vld [vmem:[#allocation6 + $0x48] sm:$0xf]
    %v1072 = vld [vmem:[#allocation6 + $0x4c] sm:$0xf]
    %v1073 = vld [vmem:[#allocation6 + $0x50] sm:$0xf]
    %v1074 = vld [vmem:[#allocation6 + $0x54] sm:$0xf]
    %v1075 = vld [vmem:[#allocation6 + $0x58] sm:$0xf]
    %v1076 = vld [vmem:[#allocation6 + $0x5c] sm:$0xf]
    %v1077 = vld [vmem:[#allocation6 + $0x60] sm:$0xf]
    %v1078 = vld [vmem:[#allocation6 + $0x64] sm:$0xf]
    %v1079 = vld [vmem:[#allocation6 + $0x68] sm:$0xf]
    %v1080 = vld [vmem:[#allocation6 + $0x6c] sm:$0xf]
    %v1081 = vld [vmem:[#allocation6 + $0x70] sm:$0xf]
    %v1082 = vld [vmem:[#allocation6 + $0x74] sm:$0xf]
    %v1083 = vld [vmem:[#allocation6 + $0x78] sm:$0xf]
    %v1084 = vld [vmem:[#allocation6 + $0x7c] sm:$0xf]
    %v1117 = vunpack.c.l.b16 %v1053
    %v1118 = vunpack.c.l.b16 %v1054
    %v1119 = vunpack.c.l.b16 %v1055
    %v1120 = vunpack.c.l.b16 %v1056
    %v1121 = vunpack.c.l.b16 %v1057
    %v1122 = vunpack.c.l.b16 %v1058
    %v1123 = vunpack.c.l.b16 %v1059
    %v1124 = vunpack.c.l.b16 %v1060
    %v1125 = vunpack.c.l.b16 %v1061
    %v1126 = vunpack.c.l.b16 %v1062
    %v1127 = vunpack.c.l.b16 %v1063
    %v1128 = vunpack.c.l.b16 %v1064
    %v1129 = vunpack.c.l.b16 %v1065
    %v1130 = vunpack.c.l.b16 %v1066
    %v1131 = vunpack.c.l.b16 %v1067
    %v1132 = vunpack.c.l.b16 %v1068
    %v1133 = vunpack.c.l.b16 %v1069
    %v1134 = vunpack.c.l.b16 %v1070
    %v1135 = vunpack.c.l.b16 %v1071
    %v1136 = vunpack.c.l.b16 %v1072
    %v1137 = vunpack.c.l.b16 %v1073
    %v1138 = vunpack.c.l.b16 %v1074
    %v1139 = vunpack.c.l.b16 %v1075
    %v1140 = vunpack.c.l.b16 %v1076
    %v1141 = vunpack.c.l.b16 %v1077
    %v1142 = vunpack.c.l.b16 %v1078
    %v1143 = vunpack.c.l.b16 %v1079
    %v1144 = vunpack.c.l.b16 %v1080
    %v1145 = vunpack.c.l.b16 %v1081
    %v1146 = vunpack.c.l.b16 %v1082
    %v1147 = vunpack.c.l.b16 %v1083
    %v1148 = vunpack.c.l.b16 %v1084
    %v1149 = vpack.c.b16 %v1118, %v1117
    %v1150 = vpack.c.b16 %v1120, %v1119
    %v1151 = vpack.c.b16 %v1122, %v1121
    %v1152 = vpack.c.b16 %v1124, %v1123
    %v1153 = vpack.c.b16 %v1126, %v1125
    %v1154 = vpack.c.b16 %v1128, %v1127
    %v1155 = vpack.c.b16 %v1130, %v1129
    %v1156 = vpack.c.b16 %v1132, %v1131
    %v1157 = vpack.c.b16 %v1134, %v1133
    %v1158 = vpack.c.b16 %v1136, %v1135
    %v1159 = vpack.c.b16 %v1138, %v1137
    %v1160 = vpack.c.b16 %v1140, %v1139
    %v1161 = vpack.c.b16 %v1142, %v1141
    %v1162 = vpack.c.b16 %v1144, %v1143
    %v1163 = vpack.c.b16 %v1146, %v1145
    %v1164 = vpack.c.b16 %v1148, %v1147
    %1181 = vmatprep.subr.bf16.mxu0 0
    %1182 = vmatpush1.bf16.msra.mxu0 %v1149
    %1183 = vmatprep.subr.bf16.mxu0 0
    %1184 = vmatpush1.bf16.msra.mxu0 %v1150
    %1185 = vmatprep.subr.bf16.mxu0 0
    %1186 = vmatpush1.bf16.msra.mxu0 %v1151
    %1187 = vmatprep.subr.bf16.mxu0 0
    %1188 = vmatpush1.bf16.msra.mxu0 %v1152
    %1189 = vmatprep.subr.bf16.mxu0 0
    %1190 = vmatpush1.bf16.msra.mxu0 %v1153
    %1191 = vmatprep.subr.bf16.mxu0 0
    %1192 = vmatpush1.bf16.msra.mxu0 %v1154
    %1193 = vmatprep.subr.bf16.mxu0 0
    %1194 = vmatpush1.bf16.msra.mxu0 %v1155
    %1195 = vmatprep.subr.bf16.mxu0 0
    %1196 = vmatpush1.bf16.msra.mxu0 %v1156
    %1197 = vmatprep.subr.bf16.mxu0 0
    %1198 = vmatpush1.bf16.msra.mxu0 %v1157
    %1199 = vmatprep.subr.bf16.mxu0 0
    %1200 = vmatpush1.bf16.msra.mxu0 %v1158
    %1201 = vmatprep.subr.bf16.mxu0 0
    %1202 = vmatpush1.bf16.msra.mxu0 %v1159
    %1203 = vmatprep.subr.bf16.mxu0 0
    %1204 = vmatpush1.bf16.msra.mxu0 %v1160
    %1205 = vmatprep.subr.bf16.mxu0 0
    %1206 = vmatpush1.bf16.msra.mxu0 %v1161
    %1207 = vmatprep.subr.bf16.mxu0 0
    %1208 = vmatpush1.bf16.msra.mxu0 %v1162
    %1209 = vmatprep.subr.bf16.mxu0 0
    %1210 = vmatpush1.bf16.msra.mxu0 %v1163
    %1211 = vmatprep.subr.bf16.mxu0 0
    %1212 = vmatpush1.bf16.msra.mxu0 %v1164
    %1213 = vmatprep.mubr.bf16.mxu0 %v1052
    %1214 = vmatmul.mubr.bf16.gmra.mrb[0].mxu0 %v1051
    %v1215 = vpop.f32.mrb[0].mxu0
    %v1216 = vadd.f32 0.0, %v1215
    %v1217 = vpop.f32.mrb[0].mxu0
    %v1218 = vpop.f32.mrb[0].mxu0
    %v1219 = vpop.f32.mrb[0].mxu0
    %1220 = vdwg.mxu0
    %v1221 = vmax.f32 %v1216, -5.0
    %v1222 = vmin.f32 %v1221, 5.0
    %1223 = vst [vmem:[%s6] sm:$0xff] %v1222
    // Predicated region
    $region38: #{_forward_impl.1} parent=1 // pred_check
      _
    $region39: #{_forward_impl.1} parent=1 // pred_check_branch
      %1225 = sbr.rel (0) target = $region41
    $region40: #{_forward_impl.1} parent=1 // pred_region
      _
    $region41: #{_forward_impl.1} parent=1 // pred_fallthru
      _
    // Predicated region
    $region42: #{_forward_impl.1} parent=1 // pred_check
      _
    $region43: #{_forward_impl.1} parent=1 // pred_check_branch
      %1227 = sbr.rel (0) target = $region45
    $region44: #{_forward_impl.1} parent=1 // pred_region
      _
    $region45: #{_forward_impl.1} parent=1 // pred_fallthru
      _
    %1228 = vsyncpa [#allocation3], 1
    %1229 = vsyncpa [#allocation5], 1

</llo_original>
